<compile_context>
chip_gen: v7x
topology: tpu7x:2x2x1
jax: 0.10.0
libtpu: 0.0.40
codegen_flags: <defaults>
</compile_context>

<pallas_src>
import math

import jax
import jax.numpy as jnp
from jax.experimental import pallas as pl
from jax.experimental.pallas import tpu as pltpu

LANE = 128
SUBLANE = 8


def _round_up(x, m):
    return ((x + m - 1) // m) * m


def _cdiv(a, b):
    return -(-a // b)


def _derive_hw_tiling(HW, thw_max):
    """(HW_pad, THW, n_hw_tiles): THW*n == HW_pad, THW % 128 == 0, HW_pad-HW < THW
    (padding confined to the last tile), minimizing padded width then tile count."""
    HW_lane = _round_up(HW, LANE)
    thw_cap = min(max(LANE, _round_up(thw_max, LANE)), HW_lane)
    if HW_lane <= thw_cap:
        return HW_lane, HW_lane, 1
    t_min = min(512, thw_cap)
    cands = []
    for n_t in range(1, HW_lane // LANE + 1):
        t = _round_up(_cdiv(HW, n_t), LANE)
        if t > thw_cap:
            continue
        if n_t * t - HW >= t:          # last tile would be pure padding
            continue
        cands.append((n_t * t, n_t, t))
    big = [c for c in cands if c[2] >= t_min]
    pool = big if big else cands
    padded, n_t, t = min(pool)
    return padded, t, n_t


def _derive_row_tiling(NC, C, max_row_units, min_row_tiles):
    """(NC_pad, TNC, n_row_tiles). Row padding capped at lcm(C,8)-1; small ragged
    NC uses a single full-height tile (block dim == array dim -> no padding)."""
    row_align = (C * SUBLANE) // math.gcd(C, SUBLANE)            # lcm(C, 8)
    if NC % row_align != 0 and NC <= row_align * max_row_units:
        return NC, NC, 1
    NC_pad = _round_up(NC, row_align)
    Q = NC_pad // row_align
    cap = min(max_row_units, Q)
    if Q >= min_row_tiles:                                       # megacore (v7x)
        cap = max(1, min(cap, Q // min_row_tiles))
    u = max(d for d in range(1, cap + 1) if Q % d == 0)
    TNC = u * row_align
    return NC_pad, TNC, NC_pad // TNC


def efficientnet_forward(x, mean, std, w, b, *, thw_max=4096, max_row_units=16,
                         min_row_tiles=2, xn_dtype=jnp.float32):
    """x: (N, C, H, W) NCHW. Returns (logits (N, K), xn (N, C, H, W))."""
    N, C, H, W = x.shape
    K = w.shape[1]
    HW = H * W
    NC = N * C

    HW_pad, THW, n_hw_tiles = _derive_hw_tiling(HW, thw_max)
    NC_pad, TNC, n_row_tiles = _derive_row_tiling(NC, C, max_row_units, min_row_tiles)
    KP = _round_up(K, LANE)                                      # lane-dense logits
    SPT = TNC // C                                               # samples per row tile
    NS_pad = NC_pad // C

    # ---- glue: 2-D view; pad ONLY when shapes don't already align ----------
    x2d = x.reshape(NC, HW)
    if x2d.dtype != jnp.float32:
        x2d = x2d.astype(jnp.float32)
    pad_rows = NC_pad - NC
    pad_lanes = HW_pad - HW
    if pad_rows or pad_lanes:
        x2d = jnp.pad(x2d, ((0, pad_rows), (0, pad_lanes)))

    # Per-row channel stats precomputed once (row r of any tile is channel r % C
    # because TNC is a multiple of C) -> tiny resident VMEM columns.
    mean_v = jnp.asarray(mean, jnp.float32).reshape(C)
    invstd_v = 1.0 / jnp.asarray(std, jnp.float32).reshape(C)
    mean_col = jnp.tile(mean_v, TNC // C).reshape(TNC, 1)
    invstd_col = jnp.tile(invstd_v, TNC // C).reshape(TNC, 1)

    # Tiny classifier-head constants; fold the 1/HW of the GAP into w.
    w_padk = jnp.zeros((C, KP), jnp.float32).at[:, :K].set(w.astype(jnp.float32))
    wtile = jnp.tile(w_padk / float(HW), (SPT, 1))               # (TNC, KP)
    b_pad = jnp.zeros((1, KP), jnp.float32).at[0, :K].set(b.astype(jnp.float32))
    # onehot[s, r] = 1 iff row r belongs to sample s (segmented channel sum).
    onehot = (jnp.arange(TNC)[None, :] // C == jnp.arange(SPT)[:, None]).astype(
        jnp.float32)                                             # (SPT, TNC)

    last_j = n_hw_tiles - 1

    def kernel(mean_ref, invstd_ref, x_ref, onehot_ref, wtile_ref, b_ref,
               xn_ref, logits_ref, acc_ref):
        j = pl.program_id(1)

        xn = (x_ref[...] - mean_ref[...]) * invstd_ref[...]      # VPU, lane broadcast
        xn_ref[...] = xn.astype(xn_ref.dtype)                    # lane-dense store

        @pl.when(j == 0)
        def _():
            acc_ref[...] = jnp.zeros_like(acc_ref)

        def lane_bucket_sum(a):
            # Lane-bucketed partial sums: pure VPU adds; the single cross-lane
            # (XLU) reduce happens once in the epilogue.
            partial = a[:, 0:LANE]
            for cidx in range(1, THW // LANE):
                partial = partial + a[:, cidx * LANE:(cidx + 1) * LANE]
            return partial

        if pad_lanes:
            # Padding is confined to the last HW tile; mask only there.
            @pl.when(j != last_j)
            def _():
                acc_ref[...] += lane_bucket_sum(xn)

            @pl.when(j == last_j)
            def _():
                lane = (jax.lax.broadcasted_iota(jnp.int32, (TNC, THW), 1)
                        + last_j * THW)
                acc_ref[...] += lane_bucket_sum(jnp.where(lane < HW, xn, 0.0))
        else:
            acc_ref[...] += lane_bucket_sum(xn)

        @pl.when(j == last_j)
        def _():
            row_sum = jnp.sum(acc_ref[...], axis=1, keepdims=True)   # (TNC, 1)
            prod = row_sum * wtile_ref[...]                          # (TNC, KP)
            logits_ref[...] = (
                jnp.dot(onehot_ref[...], prod, preferred_element_type=jnp.float32)
                + b_ref[...])

    block_bytes = TNC * THW * 4
    resident_bytes = 4 * (2 * TNC + SPT * TNC + TNC * KP + KP + TNC * LANE + SPT * KP)
    # 2x double-buffered streaming in + out, plus residents and headroom.
    vmem_limit = int(min(56 << 20,
                         max(32 << 20, 4 * block_bytes + 2 * resident_bytes + (2 << 20))))

    cost = pl.CostEstimate(
        flops=int(3 * NC_pad * HW_pad + 2 * n_row_tiles * SPT * TNC * KP),
        transcendentals=0,
        bytes_accessed=int(4 * NC_pad * HW_pad
                           + NC_pad * HW_pad * jnp.dtype(xn_dtype).itemsize
                           + 4 * (NS_pad * KP + TNC * KP + SPT * TNC)),
    )

    xn_pad, logits_pad = pl.pallas_call(
        kernel,
        grid=(n_row_tiles, n_hw_tiles),
        in_specs=[
            pl.BlockSpec((TNC, 1), lambda i, j: (0, 0)),          # mean col (resident)
            pl.BlockSpec((TNC, 1), lambda i, j: (0, 0)),          # 1/std col (resident)
            pl.BlockSpec((TNC, THW), lambda i, j: (i, j)),        # x tile (streamed)
            pl.BlockSpec((SPT, TNC), lambda i, j: (0, 0)),        # onehot (resident)
            pl.BlockSpec((TNC, KP), lambda i, j: (0, 0)),         # wtile  (resident)
            pl.BlockSpec((1, KP), lambda i, j: (0, 0)),           # bias   (resident)
        ],
        out_specs=(
            pl.BlockSpec((TNC, THW), lambda i, j: (i, j)),        # xn tile (streamed)
            pl.BlockSpec((SPT, KP), lambda i, j: (i, 0)),         # logits (epilogue)
        ),
        out_shape=(
            jax.ShapeDtypeStruct((NC_pad, HW_pad), xn_dtype),
            jax.ShapeDtypeStruct((NS_pad, KP), jnp.float32),
        ),
        scratch_shapes=[pltpu.VMEM((TNC, LANE), jnp.float32)],
        compiler_params=pltpu.CompilerParams(
            dimension_semantics=("parallel", "arbitrary"),
            vmem_limit_bytes=vmem_limit,
        ),
        cost_estimate=cost,
    )(mean_col, invstd_col, x2d, onehot, wtile, b_pad)

    logits = logits_pad[:N, :K]
    xn2d = xn_pad if (pad_rows == 0 and pad_lanes == 0) else xn_pad[:NC, :HW]
    xn = xn2d.reshape(N, C, H, W)
    return logits, xn


if __name__ == "__main__":
    N, C, H, W = 2, 3, 16, 16   # C fixed at 3 by the module's (mean, std)
    K = 10                      # synthetic number of classes for the stub head

    key = jax.random.PRNGKey(0)
    kx, kw, kb = jax.random.split(key, 3)

    x = jax.random.uniform(kx, (N, C, H, W), dtype=jnp.float32)
    mean = jnp.array([0.485, 0.456, 0.406], dtype=jnp.float32)
    std = jnp.array([0.229, 0.224, 0.225], dtype=jnp.float32)
    w = jax.random.normal(kw, (C, K), dtype=jnp.float32) * 0.1
    b = jax.random.normal(kb, (K,), dtype=jnp.float32) * 0.01

    logits, xn = efficientnet_forward(x, mean, std, w, b)
    logits = jax.block_until_ready(logits)
    xn = jax.block_until_ready(xn)

    # Pure-JAX reference for correctness.
    xn_ref = (x - mean.reshape(1, C, 1, 1)) / std.reshape(1, C, 1, 1)
    feats_ref = xn_ref.mean(axis=(2, 3))
    logits_ref = feats_ref @ w + b

    assert jnp.allclose(xn, xn_ref, rtol=1e-5, atol=1e-5), "normalization mismatch"
    assert jnp.allclose(logits, logits_ref, rtol=1e-5, atol=1e-4), "head mismatch"

    print("KERNEL_OK")
</pallas_src>

<mosaic_0001>
module attributes {stable_mosaic.version = 11 : i64} {
  func.func @kernel(%arg0: i32, %arg1: i32, %arg2: memref<6x1xf32, #tpu.memory_space<vmem>>, %arg3: memref<6x1xf32, #tpu.memory_space<vmem>>, %arg4: memref<6x256xf32, #tpu.memory_space<vmem>>, %arg5: memref<2x6xf32, #tpu.memory_space<vmem>>, %arg6: memref<6x128xf32, #tpu.memory_space<vmem>>, %arg7: memref<1x128xf32, #tpu.memory_space<vmem>>, %arg8: memref<6x256xf32, #tpu.memory_space<vmem>>, %arg9: memref<2x128xf32, #tpu.memory_space<vmem>>, %arg10: memref<6x128xf32, #tpu.memory_space<vmem>>) attributes {dimension_semantics = [#tpu.dimension_semantics<parallel>, #tpu.dimension_semantics<arbitrary>], iteration_bounds = array<i64: 1, 1>, scalar_prefetch = 0 : i64, scratch_operands = 1 : i64, tpu.core_type = #tpu.core_type<tc>, window_params = [{pipeline_mode = #tpu.pipeline_mode<synchronous>, transform_indices = @transform_0, window_bounds = array<i64: 6, 1>}, {pipeline_mode = #tpu.pipeline_mode<synchronous>, transform_indices = @transform_1, window_bounds = array<i64: 6, 1>}, {transform_indices = @transform_2, window_bounds = array<i64: 6, 256>}, {pipeline_mode = #tpu.pipeline_mode<synchronous>, transform_indices = @transform_3, window_bounds = array<i64: 2, 6>}, {pipeline_mode = #tpu.pipeline_mode<synchronous>, transform_indices = @transform_4, window_bounds = array<i64: 6, 128>}, {pipeline_mode = #tpu.pipeline_mode<synchronous>, transform_indices = @transform_5, window_bounds = array<i64: 1, 128>}, {transform_indices = @transform_6, window_bounds = array<i64: 6, 256>}, {transform_indices = @transform_7, window_bounds = array<i64: 2, 128>}]} {
    %c0 = arith.constant 0 : index
    %c0_0 = arith.constant 0 : index
    %0 = vector.load %arg4[%c0, %c0_0] : memref<6x256xf32, #tpu.memory_space<vmem>>, vector<6x256xf32>
    %c0_1 = arith.constant 0 : index
    %c0_2 = arith.constant 0 : index
    %1 = vector.load %arg2[%c0_1, %c0_2] : memref<6x1xf32, #tpu.memory_space<vmem>>, vector<6x1xf32>
    %2 = vector.broadcast %1 : vector<6x1xf32> to vector<6x256xf32>
    %3 = arith.subf %0, %2 : vector<6x256xf32>
    %c0_3 = arith.constant 0 : index
    %c0_4 = arith.constant 0 : index
    %4 = vector.load %arg3[%c0_3, %c0_4] : memref<6x1xf32, #tpu.memory_space<vmem>>, vector<6x1xf32>
    %5 = vector.broadcast %4 : vector<6x1xf32> to vector<6x256xf32>
    %6 = arith.mulf %3, %5 : vector<6x256xf32>
    %c0_5 = arith.constant 0 : index
    %c0_6 = arith.constant 0 : index
    %7 = vector.load %arg8[%c0_5, %c0_6] : memref<6x256xf32, #tpu.memory_space<vmem>>, vector<6x256xf32>
    tpu.vector_store %arg8[%c0_5, %c0_6], %6 {strides = array<i32>} : memref<6x256xf32, #tpu.memory_space<vmem>>, vector<6x256xf32>,
    %c0_i32 = arith.constant 0 : i32
    %8 = arith.cmpi eq, %arg1, %c0_i32 : i32
    %9 = arith.extui %8 : i1 to i32
    %c0_i32_7 = arith.constant 0 : i32
    %10 = arith.cmpi ne, %9, %c0_i32_7 : i32
    scf.if %10 {
      %cst = arith.constant 0.000000e+00 : f32
      %20 = vector.broadcast %cst : f32 to vector<6x128xf32>
      %c0_14 = arith.constant 0 : index
      %c0_15 = arith.constant 0 : index
      %21 = vector.load %arg10[%c0_14, %c0_15] : memref<6x128xf32, #tpu.memory_space<vmem>>, vector<6x128xf32>
      tpu.vector_store %arg10[%c0_14, %c0_15], %20 {strides = array<i32>} : memref<6x128xf32, #tpu.memory_space<vmem>>, vector<6x128xf32>,
    } else {
    }
    %c0_8 = arith.constant 0 : index
    %c0_9 = arith.constant 0 : index
    %11 = vector.load %arg10[%c0_8, %c0_9] : memref<6x128xf32, #tpu.memory_space<vmem>>, vector<6x128xf32>
    %12 = vector.extract_strided_slice %6 {offsets = [0, 0], sizes = [6, 128], strides = [1, 1]} : vector<6x256xf32> to vector<6x128xf32>
    %13 = vector.extract_strided_slice %6 {offsets = [0, 128], sizes = [6, 128], strides = [1, 1]} : vector<6x256xf32> to vector<6x128xf32>
    %14 = arith.addf %12, %13 : vector<6x128xf32>
    %15 = arith.addf %11, %14 : vector<6x128xf32>
    %c0_10 = arith.constant 0 : index
    %c0_11 = arith.constant 0 : index
    %16 = vector.load %arg10[%c0_10, %c0_11] : memref<6x128xf32, #tpu.memory_space<vmem>>, vector<6x128xf32>
    tpu.vector_store %arg10[%c0_10, %c0_11], %15 {strides = array<i32>} : memref<6x128xf32, #tpu.memory_space<vmem>>, vector<6x128xf32>,
    %c0_i32_12 = arith.constant 0 : i32
    %17 = arith.cmpi eq, %arg1, %c0_i32_12 : i32
    %18 = arith.extui %17 : i1 to i32
    %c0_i32_13 = arith.constant 0 : i32
    %19 = arith.cmpi ne, %18, %c0_i32_13 : i32
    scf.if %19 {
      %c0_14 = arith.constant 0 : index
      %c0_15 = arith.constant 0 : index
      %20 = vector.load %arg10[%c0_14, %c0_15] : memref<6x128xf32, #tpu.memory_space<vmem>>, vector<6x128xf32>
      %cst = arith.constant dense<0.000000e+00> : vector<6xf32>
      %21 = vector.multi_reduction <add>, %20, %cst [1] : vector<6x128xf32> to vector<6xf32>
      %22 = vector.shape_cast %21 : vector<6xf32> to vector<6x1xf32>
      %c0_16 = arith.constant 0 : index
      %c0_17 = arith.constant 0 : index
      %23 = vector.load %arg6[%c0_16, %c0_17] : memref<6x128xf32, #tpu.memory_space<vmem>>, vector<6x128xf32>
      %24 = vector.broadcast %22 : vector<6x1xf32> to vector<6x128xf32>
      %25 = arith.mulf %24, %23 : vector<6x128xf32>
      %c0_18 = arith.constant 0 : index
      %c0_19 = arith.constant 0 : index
      %26 = vector.load %arg5[%c0_18, %c0_19] : memref<2x6xf32, #tpu.memory_space<vmem>>, vector<2x6xf32>
      %cst_20 = arith.constant dense<0.000000e+00> : vector<2x128xf32>
      %27 = tpu.matmul %26, %25, %cst_20 {dimension_numbers = #tpu.dot_dimension_numbers<[1], [0], [0], [1], [0, 0, 1, 1], [], []>} : vector<2x6xf32>, vector<6x128xf32>, vector<2x128xf32> -> vector<2x128xf32>
      %c0_21 = arith.constant 0 : index
      %c0_22 = arith.constant 0 : index
      %28 = vector.load %arg7[%c0_21, %c0_22] : memref<1x128xf32, #tpu.memory_space<vmem>>, vector<1x128xf32>
      %29 = vector.broadcast %28 : vector<1x128xf32> to vector<2x128xf32>
      %30 = arith.addf %27, %29 : vector<2x128xf32>
      %c0_23 = arith.constant 0 : index
      %c0_24 = arith.constant 0 : index
      %31 = vector.load %arg9[%c0_23, %c0_24] : memref<2x128xf32, #tpu.memory_space<vmem>>, vector<2x128xf32>
      tpu.vector_store %arg9[%c0_23, %c0_24], %30 {strides = array<i32>} : memref<2x128xf32, #tpu.memory_space<vmem>>, vector<2x128xf32>,
    } else {
    }
    return
  }
  func.func @transform_0(%arg0: i32, %arg1: i32) -> (i32, i32) {
    %c0_i32 = arith.constant 0 : i32
    %c0_i32_0 = arith.constant 0 : i32
    %c0_i32_1 = arith.constant 0 : i32
    return %c0_i32, %c0_i32_0 : i32, i32
  }
  func.func @transform_1(%arg0: i32, %arg1: i32) -> (i32, i32) {
    %c0_i32 = arith.constant 0 : i32
    %c0_i32_0 = arith.constant 0 : i32
    %c0_i32_1 = arith.constant 0 : i32
    return %c0_i32, %c0_i32_0 : i32, i32
  }
  func.func @transform_2(%arg0: i32, %arg1: i32) -> (i32, i32) {
    %c0_i32 = arith.constant 0 : i32
    return %arg0, %arg1 : i32, i32
  }
  func.func @transform_3(%arg0: i32, %arg1: i32) -> (i32, i32) {
    %c0_i32 = arith.constant 0 : i32
    %c0_i32_0 = arith.constant 0 : i32
    %c0_i32_1 = arith.constant 0 : i32
    return %c0_i32, %c0_i32_0 : i32, i32
  }
  func.func @transform_4(%arg0: i32, %arg1: i32) -> (i32, i32) {
    %c0_i32 = arith.constant 0 : i32
    %c0_i32_0 = arith.constant 0 : i32
    %c0_i32_1 = arith.constant 0 : i32
    return %c0_i32, %c0_i32_0 : i32, i32
  }
  func.func @transform_5(%arg0: i32, %arg1: i32) -> (i32, i32) {
    %c0_i32 = arith.constant 0 : i32
    %c0_i32_0 = arith.constant 0 : i32
    %c0_i32_1 = arith.constant 0 : i32
    return %c0_i32, %c0_i32_0 : i32, i32
  }
  func.func @transform_6(%arg0: i32, %arg1: i32) -> (i32, i32) {
    %c0_i32 = arith.constant 0 : i32
    return %arg0, %arg1 : i32, i32
  }
  func.func @transform_7(%arg0: i32, %arg1: i32) -> (i32, i32) {
    %c0_i32 = arith.constant 0 : i32
    %c0_i32_0 = arith.constant 0 : i32
    return %arg0, %c0_i32 : i32, i32
  }
}

</mosaic_0001>

<llo_original>
// kernel: tpu_custom_call.1
$region0: #{tpu_custom_call.1}
  #allocation0 [shape = 'u32[]', space=smem, size = 0x4, offset = 0x4, fixed_abs, tag = 'smem constant byte address 0x4 - core index']
  #allocation1 [shape = 'u32[144,128]{1,0:T(1,128)}', space=vmem, size = 0x12000, scoped, tag = 'internal scratch']
  #allocation2 [shape = 'f32[6,128]{1,0:T(8,128)}', space=vmem, size = 0x1000, scoped, tag = 'scratch operand']
  %s0 = inlined_call_operand.vmem [shape: f32[6,1], index: 0, kind: input, shape index: {}]
  %s1 = inlined_call_operand.vmem [shape: f32[6,1], index: 1, kind: input, shape index: {}]
  %s2 = inlined_call_operand.vmem [shape: f32[6,256], index: 2, kind: input, shape index: {}]
  %s3 = inlined_call_operand.vmem [shape: f32[2,6], index: 3, kind: input, shape index: {}]
  %s4 = inlined_call_operand.vmem [shape: f32[6,128], index: 4, kind: input, shape index: {}]
  %s5 = inlined_call_operand.vmem [shape: f32[1,128], index: 5, kind: input, shape index: {}]
  %s6 = inlined_call_operand.hbm [shape: f32[6,256], index: 6, kind: output, shape index: {0}]
  %s7 = inlined_call_operand.hbm [shape: f32[2,128], index: 7, kind: output, shape index: {1}]
  %8 = xla_tuple %s6, %s7
  %s9 = sld [smem:[#allocation0]]
  $region50: #{tpu_custom_call.1} parent=0
    _
  %s11 = ssub.s32 1, %s9
  %s12 = scalar_select 0, %s11, %s9
  $region1: #{tpu_custom_call.1} parent=0
    #allocation3 [shape = 'u8[8192]{0}', space=vmem, size = 0x2000, scoped, tag = 'output window, operand 0, single buffered']
    #allocation4 [shape = 's32[1]{0}', space=sflag, size = 0x4, scoped, tag = 'scoped memory for tpu_custom_call.1']
    #allocation5 [shape = 'u8[1024]{0}', space=vmem, size = 0x400, scoped, tag = 'output window, operand 1, single buffered']
    #allocation6 [shape = 's32[1]{0}', space=sflag, size = 0x4, scoped, tag = 'scoped memory for tpu_custom_call.1']
    %13 = vsyncpa [#allocation4], 0
    %14 = vsyncpa [#allocation6], 0
    // Predicated region
    $region2: #{tpu_custom_call.1} parent=1 // pred_check
      _
    $region3: #{tpu_custom_call.1} parent=1 // pred_check_branch
      %16 = sbr.rel (0) target = $region5
    $region4: #{tpu_custom_call.1} parent=1 // pred_region
      _
    $region5: #{tpu_custom_call.1} parent=1 // pred_fallthru
      _
    // Predicated region
    $region6: #{tpu_custom_call.1} parent=1 // pred_check
      _
    $region7: #{tpu_custom_call.1} parent=1 // pred_check_branch
      %18 = sbr.rel (0) target = $region9
    $region8: #{tpu_custom_call.1} parent=1 // pred_region
      _
    $region9: #{tpu_custom_call.1} parent=1 // pred_fallthru
      _
    // Predicated region
    $region10: #{tpu_custom_call.1} parent=1 // pred_check
      _
    $region11: #{tpu_custom_call.1} parent=1 // pred_check_branch
      %20 = sbr.rel (0) target = $region13
    $region12: #{tpu_custom_call.1} parent=1 // pred_region
      _
    $region13: #{tpu_custom_call.1} parent=1 // pred_fallthru
      _
    // Predicated region
    $region14: #{tpu_custom_call.1} parent=1 // pred_check
      _
    $region15: #{tpu_custom_call.1} parent=1 // pred_check_branch
      %22 = sbr.rel (0) target = $region17
    $region16: #{tpu_custom_call.1} parent=1 // pred_region
      _
    $region17: #{tpu_custom_call.1} parent=1 // pred_fallthru
      _
    // Predicated region
    $region18: #{tpu_custom_call.1} parent=1 // pred_check
      _
    $region19: #{tpu_custom_call.1} parent=1 // pred_check_branch
      %24 = sbr.rel (0) target = $region21
    $region20: #{tpu_custom_call.1} parent=1 // pred_region
      _
    $region21: #{tpu_custom_call.1} parent=1 // pred_fallthru
      _
    // Predicated region
    $region22: #{tpu_custom_call.1} parent=1 // pred_check
      _
    $region23: #{tpu_custom_call.1} parent=1 // pred_check_branch
      %26 = sbr.rel (0) target = $region25
    $region24: #{tpu_custom_call.1} parent=1 // pred_region
      _
    $region25: #{tpu_custom_call.1} parent=1 // pred_fallthru
      _
    %v27 = vld [vmem:[%s2] sm:$0x3f]
    %v28 = vld [vmem:[%s2 + $0x8] sm:$0x3f]
    %v29 = vld [vmem:[%s0] sm:$0x3f]
    %31 = vset.pattern.permute.xlu0 0
    %32 = vperm.xlu0 %31, %v29
    %v33 = vpop.permute.xlu0 %32
    %v35 = vsub.f32 %v27, %v33
    %v36 = vsub.f32 %v28, %v33
    %v37 = vld [vmem:[%s1] sm:$0x3f]
    %39 = vset.pattern.permute.xlu0 0
    %40 = vperm.xlu0 %39, %v37
    %v41 = vpop.permute.xlu0 %40
    %v43 = vmul.f32 %v35, %v41
    %v44 = vmul.f32 %v36, %v41
    %45 = vst [vmem:[#allocation3] sm:$0x3f] %v43
    %46 = vst [vmem:[#allocation3 + $0x8] sm:$0x3f] %v44
    %p47 = scmp.eq.s32.totalorder 0, 0
    // Predicated region
    $region26: #{tpu_custom_call.1} parent=1 // pred_check
      %p48 = pneg %p47
    $region27: #{tpu_custom_call.1} parent=1 // pred_check_branch
      %50 = sbr.rel (%p48) target = $region29
    $region28: #{tpu_custom_call.1} parent=1 // pred_region
      %51 = vst [vmem:[#allocation2] sm:$0x3f] 0.0
    $region29: #{tpu_custom_call.1} parent=1 // pred_fallthru
      _
    %v52 = vld [vmem:[#allocation2] sm:$0x3f]
    %v53 = vadd.f32 %v43, %v44
    %v54 = vadd.f32 %v52, %v53
    %55 = vst [vmem:[#allocation2] sm:$0x3f] %v54
    // Predicated region
    $region30: #{tpu_custom_call.1} parent=1 // pred_check
      %p56 = pneg %p47
    $region31: #{tpu_custom_call.1} parent=1 // pred_check_branch
      %58 = sbr.rel (%p56) target = $region33
    $region32: #{tpu_custom_call.1} parent=1 // pred_region
      %v59 = vld [vmem:[#allocation2] sm:$0x3f]
      %vm60 = vcmask 1045504
      %v61 = vsel %vm60, %v59, 0.0
      %62 = vadd.xlane.f32.xlu0 %v61
      %v63 = vpop.xlane.xlu0 %62
      %v64 = vld [vmem:[%s4] sm:$0x3f]
      %v65 = vmul.f32 %v63, %v64
      %v66 = vld [vmem:[%s3] sm:$0x3]
      %v67 = vld [vmem:[%s5] sm:$0x1]
      %v69 = vlaneseq
      %v70 = vshrl.u32 %v69, 7
      %v71 = vsub.s32 0, %v70
      %v72 = vrot.slane %v67, %v71
      %vm74 = vcmask 48128
      %v76 = vsel %vm74, %v66, 0
      %v79 = vsel %vm60, %v65, 0
      %81 = vmatprep.subr.mxu0 0.0
      %82 = vmatpush1.msra.mxu0 %v79
      %83 = vmatprep.subr.mxu0 0.0
      %84 = vmatpush1.msra.mxu0 0.0
      %85 = vmatprep.subr.mxu0 0.0
      %86 = vmatpush1.msra.mxu0 0.0
      %87 = vmatprep.subr.mxu0 0.0
      %88 = vmatpush1.msra.mxu0 0.0
      %89 = vmatprep.subr.mxu0 0.0
      %90 = vmatpush1.msra.mxu0 0.0
      %91 = vmatprep.subr.mxu0 0.0
      %92 = vmatpush1.msra.mxu0 0.0
      %93 = vmatprep.subr.mxu0 0.0
      %94 = vmatpush1.msra.mxu0 0.0
      %95 = vmatprep.subr.mxu0 0.0
      %96 = vmatpush1.msra.mxu0 0.0
      %97 = vmatprep.subr.mxu0 0.0
      %98 = vmatpush1.msra.mxu0 0.0
      %99 = vmatprep.subr.mxu0 0.0
      %100 = vmatpush1.msra.mxu0 0.0
      %101 = vmatprep.subr.mxu0 0.0
      %102 = vmatpush1.msra.mxu0 0.0
      %103 = vmatprep.subr.mxu0 0.0
      %104 = vmatpush1.msra.mxu0 0.0
      %105 = vmatprep.subr.mxu0 0.0
      %106 = vmatpush1.msra.mxu0 0.0
      %107 = vmatprep.subr.mxu0 0.0
      %108 = vmatpush1.msra.mxu0 0.0
      %109 = vmatprep.subr.mxu0 0.0
      %110 = vmatpush1.msra.mxu0 0.0
      %111 = vmatprep.subr.mxu0 0.0
      %112 = vmatpush1.msra.mxu0 0.0
      %113 = vmatprep.subr.mxu0 0.0
      %114 = vmatpush1.msra.mxu0 0.0
      %115 = vmatprep.subr.mxu0 0.0
      %116 = vmatpush1.msra.mxu0 0.0
      %117 = vmatprep.subr.mxu0 0.0
      %118 = vmatpush1.msra.mxu0 0.0
      %119 = vmatprep.subr.mxu0 0.0
      %120 = vmatpush1.msra.mxu0 0.0
      %121 = vmatprep.subr.mxu0 0.0
      %122 = vmatpush1.msra.mxu0 0.0
      %123 = vmatprep.subr.mxu0 0.0
      %124 = vmatpush1.msra.mxu0 0.0
      %125 = vmatprep.subr.mxu0 0.0
      %126 = vmatpush1.msra.mxu0 0.0
      %127 = vmatprep.subr.mxu0 0.0
      %128 = vmatpush1.msra.mxu0 0.0
      %129 = vmatprep.subr.mxu0 0.0
      %130 = vmatpush1.msra.mxu0 0.0
      %131 = vmatprep.subr.mxu0 0.0
      %132 = vmatpush1.msra.mxu0 0.0
      %133 = vmatprep.subr.mxu0 0.0
      %134 = vmatpush1.msra.mxu0 0.0
      %135 = vmatprep.subr.mxu0 0.0
      %136 = vmatpush1.msra.mxu0 0.0
      %137 = vmatprep.subr.mxu0 0.0
      %138 = vmatpush1.msra.mxu0 0.0
      %139 = vmatprep.subr.mxu0 0.0
      %140 = vmatpush1.msra.mxu0 0.0
      %141 = vmatprep.subr.mxu0 0.0
      %142 = vmatpush1.msra.mxu0 0.0
      %143 = vmatprep.subr.mxu0 0.0
      %144 = vmatpush1.msra.mxu0 0.0
      %145 = vmatprep.mubr.f32.mxu0 0.0
      %146 = vmatmul.mubr.f32.gmra.mrb[0].mxu0 %v76
      %v147 = vpop.f32.mrb[0].mxu0
      %v148 = vadd.f32 %v72, %v147
      %v149 = vpop.f32.mrb[0].mxu0
      %150 = vdwg.mxu0
      %151 = vst [vmem:[#allocation5] sm:$0x3] %v148
    $region33: #{tpu_custom_call.1} parent=1 // pred_fallthru
      _
    // Predicated region
    $region34: #{tpu_custom_call.1} parent=1 // pred_check
      _
    $region35: #{tpu_custom_call.1} parent=1 // pred_check_branch
      %153 = sbr.rel (0) target = $region37
    $region36: #{tpu_custom_call.1} parent=1 // pred_region
      %s155 = ssub.s32 256, 256
      %156 = vsyncadd [#allocation4], %s155
      %s158 = sshll.u32 [#allocation3], 4
      %s159 = int_to_ptr.vmem [resolvable:$true] %s158
      %161 = dma.vmem_to_hbm [thread:$0]  %s159, 256, %s6, [#allocation4]
    $region37: #{tpu_custom_call.1} parent=1 // pred_fallthru
      _
    // Predicated region
    $region38: #{tpu_custom_call.1} parent=1 // pred_check
      _
    $region39: #{tpu_custom_call.1} parent=1 // pred_check_branch
      %163 = sbr.rel (0) target = $region41
    $region40: #{tpu_custom_call.1} parent=1 // pred_region
      %s165 = ssub.s32 32, 32
      %166 = vsyncadd [#allocation6], %s165
      %s168 = sshll.u32 [#allocation5], 4
      %s169 = int_to_ptr.vmem [resolvable:$true] %s168
      %171 = dma.vmem_to_hbm [thread:$0]  %s169, 32, %s7, [#allocation6]
    $region41: #{tpu_custom_call.1} parent=1 // pred_fallthru
      _
    // Predicated region
    $region42: #{tpu_custom_call.1} parent=1 // pred_check
      _
    $region43: #{tpu_custom_call.1} parent=1 // pred_check_branch
      %173 = sbr.rel (0) target = $region45
    $region44: #{tpu_custom_call.1} parent=1 // pred_region
      %174 = dma.done [#allocation4], 256
    $region45: #{tpu_custom_call.1} parent=1 // pred_fallthru
      _
    // Predicated region
    $region46: #{tpu_custom_call.1} parent=1 // pred_check
      _
    $region47: #{tpu_custom_call.1} parent=1 // pred_check_branch
      %176 = sbr.rel (0) target = $region49
    $region48: #{tpu_custom_call.1} parent=1 // pred_region
      %177 = dma.done [#allocation6], 32
    $region49: #{tpu_custom_call.1} parent=1 // pred_fallthru
      _
    %178 = vsyncpa [#allocation4], 1
    %179 = vsyncpa [#allocation6], 1

</llo_original>
